<compile_context>
chip_gen: v6e
topology: v6e:2x2x1
jax: 0.10.0
libtpu: 0.0.40
codegen_flags: <defaults>
</compile_context>

<pallas_src>
import jax
import jax.numpy as jnp
from jax.experimental import pallas as pl
from jax.experimental.pallas import tpu as pltpu


def _round_up(x, m):
    return ((x + m - 1) // m) * m


# ----------------------------- kernels -----------------------------

def _rnn_kernel_noh(emb_ref, wih_ref, b_rnn_ref, w_out_ref, b_out_ref, out_ref):
    """h=None: initial hidden state is zero, so the h0 @ W_hh term is dropped."""
    h1 = jnp.tanh(
        jnp.dot(emb_ref[...], wih_ref[...], preferred_element_type=jnp.float32)
        + b_rnn_ref[...])
    y = (jnp.dot(h1.astype(w_out_ref.dtype), w_out_ref[...],
                 preferred_element_type=jnp.float32)
         + b_out_ref[...])
    out_ref[...] = jax.nn.sigmoid(y)


def _rnn_kernel_h(emb_ref, h0_ref, wih_ref, whh_ref, b_rnn_ref,
                  w_out_ref, b_out_ref, out_ref):
    """Explicit initial hidden state path."""
    pre = (jnp.dot(emb_ref[...], wih_ref[...], preferred_element_type=jnp.float32)
           + jnp.dot(h0_ref[...], whh_ref[...], preferred_element_type=jnp.float32)
           + b_rnn_ref[...])
    h1 = jnp.tanh(pre)
    y = (jnp.dot(h1.astype(w_out_ref.dtype), w_out_ref[...],
                 preferred_element_type=jnp.float32)
         + b_out_ref[...])
    out_ref[...] = jax.nn.sigmoid(y)


# ----------------------------- wrapper -----------------------------

def init_params(key, vocab_size, embedding_dim):
    """Raw PyTorch-layout parameters (all f32, weights stored transposed (in,out))."""
    V, E, H = vocab_size, embedding_dim, 8
    ks = jax.random.split(key, 9)
    b_rnn = 1.0 / jnp.sqrt(E)
    b_f1 = 1.0 / jnp.sqrt(E)
    b_f2 = 1.0 / jnp.sqrt(H)
    return {
        "embedding": jax.random.normal(ks[0], (V, E), jnp.float32),
        "w_ih_t": jax.random.uniform(ks[1], (E, E), jnp.float32, -b_rnn, b_rnn),
        "w_hh_t": jax.random.uniform(ks[2], (E, E), jnp.float32, -b_rnn, b_rnn),
        "b_ih":   jax.random.uniform(ks[3], (1, E), jnp.float32, -b_rnn, b_rnn),
        "b_hh":   jax.random.uniform(ks[4], (1, E), jnp.float32, -b_rnn, b_rnn),
        "w1_t":   jax.random.uniform(ks[5], (E, H), jnp.float32, -b_f1, b_f1),
        "b1":     jax.random.uniform(ks[6], (1, H), jnp.float32, -b_f1, b_f1),
        "w2_t":   jax.random.uniform(ks[7], (H, V), jnp.float32, -b_f2, b_f2),
        "b2":     jax.random.uniform(ks[8], (1, V), jnp.float32, -b_f2, b_f2),
    }


def prepare_kernel_params(params, compute_dtype=jnp.bfloat16):
    """One-time pre-processing: fold biases, fuse fct1@fct2, pad vocab to 128, cast bf16."""
    V, E = params["embedding"].shape
    V_pad = _round_up(V, 128)

    # Folded RNN bias (exact, f32).
    b_rnn = (params["b_ih"] + params["b_hh"]).astype(jnp.float32)                 # (1,E)
    # No nonlinearity between fct1/fct2:  (h@W1+b1)@W2+b2 = h@(W1@W2) + (b1@W2+b2)
    w_out = jnp.dot(params["w1_t"], params["w2_t"],
                    preferred_element_type=jnp.float32)                           # (E,V)
    b_out = (jnp.dot(params["b1"], params["w2_t"],
                     preferred_element_type=jnp.float32) + params["b2"])          # (1,V)

    # Lane-dense output: pad vocab axis to a multiple of 128 (padded lanes sliced off).
    w_out = jnp.pad(w_out, ((0, 0), (0, V_pad - V)))
    b_out = jnp.pad(b_out, ((0, 0), (0, V_pad - V)))

    return {
        "vocab_size": V,                                   # python int (static)
        "embedding": params["embedding"].astype(compute_dtype),
        "w_ih_t": params["w_ih_t"].astype(compute_dtype),
        "w_hh_t": params["w_hh_t"].astype(compute_dtype),
        "b_rnn": b_rnn,                                    # f32, added to f32 accumulator
        "w_out": w_out.astype(compute_dtype),              # (E, V_pad)
        "b_out": b_out.astype(jnp.float32),                # (1, V_pad)
    }


def rnn_embedding_forward(tokens, kparams, h=None):
    """tokens: (N,) int32 -> (1, N, V) f32, matching PyTorch (num_layers, batch, vocab)."""
    emb_table = kparams["embedding"]
    E = emb_table.shape[1]
    V = kparams["vocab_size"]
    V_pad = kparams["w_out"].shape[1]
    N = tokens.shape[0]

    # Row tile: >= f32 sublane (8); cap at 256 so large batches pipeline over the grid.
    TM = 256 if N >= 256 else _round_up(max(N, 1), 8)
    N_pad = _round_up(N, TM)

    # Embedding gather: index-lookup glue kept in XLA (fusing via scalar-prefetch
    # Element-gather would force a 1-row-per-grid-step kernel; not worth it here).
    emb = jnp.take(emb_table, tokens, axis=0)                                    # (N,E)
    if N_pad != N:
        emb = jnp.pad(emb, ((0, N_pad - N), (0, 0)))

    grid = (N_pad // TM,)
    row_spec = pl.BlockSpec((TM, E), lambda i: (i, 0))
    rep = lambda shape: pl.BlockSpec(shape, lambda i: (0, 0))     # replicated weights
    out_spec = pl.BlockSpec((TM, V_pad), lambda i: (i, 0))
    cparams = pltpu.CompilerParams(dimension_semantics=("parallel",))
    out_shape = jax.ShapeDtypeStruct((N_pad, V_pad), jnp.float32)

    if h is None:
        out = pl.pallas_call(
            _rnn_kernel_noh,
            out_shape=out_shape,
            grid=grid,
            in_specs=[row_spec,
                      rep((E, E)), rep((1, E)),
                      rep((E, V_pad)), rep((1, V_pad))],
            out_specs=out_spec,
            compiler_params=cparams,
        )(emb, kparams["w_ih_t"], kparams["b_rnn"],
          kparams["w_out"], kparams["b_out"])
    else:
        h0 = jnp.reshape(h, (N, E)).astype(emb_table.dtype)
        if N_pad != N:
            h0 = jnp.pad(h0, ((0, N_pad - N), (0, 0)))
        out = pl.pallas_call(
            _rnn_kernel_h,
            out_shape=out_shape,
            grid=grid,
            in_specs=[row_spec, row_spec,
                      rep((E, E)), rep((E, E)), rep((1, E)),
                      rep((E, V_pad)), rep((1, V_pad))],
            out_specs=out_spec,
            compiler_params=cparams,
        )(emb, h0, kparams["w_ih_t"], kparams["w_hh_t"], kparams["b_rnn"],
          kparams["w_out"], kparams["b_out"])

    return out[None, :N, :V]


# ----------------------------- references -----------------------------

def reference_forward_f32(tokens, params, h=None):
    """Pure-JAX f32 mirror of the PyTorch module (unfused)."""
    emb = jnp.take(params["embedding"], tokens, axis=0)
    N, E = emb.shape
    h0 = jnp.zeros((N, E), jnp.float32) if h is None else jnp.reshape(h, (N, E))
    h1 = jnp.tanh(emb @ params["w_ih_t"] + params["b_ih"]
                  + h0 @ params["w_hh_t"] + params["b_hh"])
    y1 = h1 @ params["w1_t"] + params["b1"]
    return jax.nn.sigmoid(y1 @ params["w2_t"] + params["b2"])[None, :, :]


def reference_forward_mirrored(tokens, kparams, h=None):
    """Pure-JAX reference using the SAME folded/padded bf16 params as the kernel."""
    V = kparams["vocab_size"]
    emb = jnp.take(kparams["embedding"], tokens, axis=0)
    N, E = emb.shape
    pre = jnp.dot(emb, kparams["w_ih_t"], preferred_element_type=jnp.float32)
    if h is not None:
        h0 = jnp.reshape(h, (N, E)).astype(emb.dtype)
        pre = pre + jnp.dot(h0, kparams["w_hh_t"], preferred_element_type=jnp.float32)
    h1 = jnp.tanh(pre + kparams["b_rnn"])
    y = (jnp.dot(h1.astype(kparams["w_out"].dtype), kparams["w_out"],
                 preferred_element_type=jnp.float32) + kparams["b_out"])
    return jax.nn.sigmoid(y)[None, :, :V]


# ----------------------------- demo / check -----------------------------

if __name__ == "__main__":
    vocab_size = 32
    embedding_dim = 32
    context_dim = 4   # unused by the module's forward (kept for signature parity)
    N = 8             # tokens -> RNN batch dim after unsqueeze(0)

    key = jax.random.PRNGKey(0)
    pkey, tkey, hkey = jax.random.split(key, 3)
    params = init_params(pkey, vocab_size, embedding_dim)
    kparams = prepare_kernel_params(params)
    tokens = jax.random.randint(tkey, (N,), 0, vocab_size, dtype=jnp.int32)
    h_init = jax.random.normal(hkey, (1, N, embedding_dim), jnp.float32)

    # h=None path (specialized kernel, no W_hh / h0 traffic).
    out0 = jax.block_until_ready(rnn_embedding_forward(tokens, kparams))
    assert out0.shape == (1, N, vocab_size)
    ref0_m = reference_forward_mirrored(tokens, kparams)
    ref0_f = reference_forward_f32(tokens, params)
    assert jnp.allclose(out0, ref0_m, atol=1e-4), "mismatch vs mirrored reference (h=None)"
    assert jnp.allclose(out0, ref0_f, atol=2e-2), "mismatch vs f32 reference (h=None)"

    # explicit-h path.
    out1 = jax.block_until_ready(rnn_embedding_forward(tokens, kparams, h=h_init))
    ref1_m = reference_forward_mirrored(tokens, kparams, h=h_init)
    ref1_f = reference_forward_f32(tokens, params, h=h_init)
    assert out1.shape == (1, N, vocab_size)
    assert jnp.allclose(out1, ref1_m, atol=1e-4), "mismatch vs mirrored reference (h given)"
    assert jnp.allclose(out1, ref1_f, atol=2e-2), "mismatch vs f32 reference (h given)"

    print("KERNEL_OK")
</pallas_src>

<mosaic_0001>
module attributes {stable_mosaic.version = 11 : i64} {
  func.func @_rnn_kernel_noh(%arg0: i32, %arg1: memref<8x32xbf16, #tpu.memory_space<vmem>>, %arg2: memref<32x32xbf16, #tpu.memory_space<vmem>>, %arg3: memref<1x32xf32, #tpu.memory_space<vmem>>, %arg4: memref<32x128xbf16, #tpu.memory_space<vmem>>, %arg5: memref<1x128xf32, #tpu.memory_space<vmem>>, %arg6: memref<8x128xf32, #tpu.memory_space<vmem>>) attributes {dimension_semantics = [#tpu.dimension_semantics<parallel>], iteration_bounds = array<i64: 1>, scalar_prefetch = 0 : i64, scratch_operands = 0 : i64, tpu.core_type = #tpu.core_type<tc>, window_params = [{transform_indices = @transform_0, window_bounds = array<i64: 8, 32>}, {pipeline_mode = #tpu.pipeline_mode<synchronous>, transform_indices = @transform_1, window_bounds = array<i64: 32, 32>}, {pipeline_mode = #tpu.pipeline_mode<synchronous>, transform_indices = @transform_2, window_bounds = array<i64: 1, 32>}, {pipeline_mode = #tpu.pipeline_mode<synchronous>, transform_indices = @transform_3, window_bounds = array<i64: 32, 128>}, {pipeline_mode = #tpu.pipeline_mode<synchronous>, transform_indices = @transform_4, window_bounds = array<i64: 1, 128>}, {transform_indices = @transform_5, window_bounds = array<i64: 8, 128>}]} {
    %c0 = arith.constant 0 : index
    %c0_0 = arith.constant 0 : index
    %0 = vector.load %arg1[%c0, %c0_0] : memref<8x32xbf16, #tpu.memory_space<vmem>>, vector<8x32xbf16>
    %c0_1 = arith.constant 0 : index
    %c0_2 = arith.constant 0 : index
    %1 = vector.load %arg2[%c0_1, %c0_2] : memref<32x32xbf16, #tpu.memory_space<vmem>>, vector<32x32xbf16>
    %cst = arith.constant dense<0.000000e+00> : vector<8x32xf32>
    %2 = tpu.matmul %0, %1, %cst {dimension_numbers = #tpu.dot_dimension_numbers<[1], [0], [0], [1], [0, 0, 1, 1], [], []>} : vector<8x32xbf16>, vector<32x32xbf16>, vector<8x32xf32> -> vector<8x32xf32>
    %c0_3 = arith.constant 0 : index
    %c0_4 = arith.constant 0 : index
    %3 = vector.load %arg3[%c0_3, %c0_4] : memref<1x32xf32, #tpu.memory_space<vmem>>, vector<1x32xf32>
    %4 = vector.broadcast %3 : vector<1x32xf32> to vector<8x32xf32>
    %5 = arith.addf %2, %4 : vector<8x32xf32>
    %6 = math.tanh %5 : vector<8x32xf32>
    %7 = arith.truncf %6 : vector<8x32xf32> to vector<8x32xbf16>
    %c0_5 = arith.constant 0 : index
    %c0_6 = arith.constant 0 : index
    %8 = vector.load %arg4[%c0_5, %c0_6] : memref<32x128xbf16, #tpu.memory_space<vmem>>, vector<32x128xbf16>
    %cst_7 = arith.constant dense<0.000000e+00> : vector<8x128xf32>
    %9 = tpu.matmul %7, %8, %cst_7 {dimension_numbers = #tpu.dot_dimension_numbers<[1], [0], [0], [1], [0, 0, 1, 1], [], []>} : vector<8x32xbf16>, vector<32x128xbf16>, vector<8x128xf32> -> vector<8x128xf32>
    %c0_8 = arith.constant 0 : index
    %c0_9 = arith.constant 0 : index
    %10 = vector.load %arg5[%c0_8, %c0_9] : memref<1x128xf32, #tpu.memory_space<vmem>>, vector<1x128xf32>
    %11 = vector.broadcast %10 : vector<1x128xf32> to vector<8x128xf32>
    %12 = arith.addf %9, %11 : vector<8x128xf32>
    %13 = arith.negf %12 : vector<8x128xf32>
    %14 = math.exp %13 : vector<8x128xf32>
    %cst_10 = arith.constant 1.000000e+00 : f32
    %15 = vector.broadcast %cst_10 : f32 to vector<8x128xf32>
    %16 = arith.addf %15, %14 : vector<8x128xf32>
    %17 = arith.divf %15, %16 : vector<8x128xf32>
    %c0_11 = arith.constant 0 : index
    %c0_12 = arith.constant 0 : index
    %18 = vector.load %arg6[%c0_11, %c0_12] : memref<8x128xf32, #tpu.memory_space<vmem>>, vector<8x128xf32>
    tpu.vector_store %arg6[%c0_11, %c0_12], %17 {strides = array<i32>} : memref<8x128xf32, #tpu.memory_space<vmem>>, vector<8x128xf32>,
    return
  }
  func.func @transform_0(%arg0: i32) -> (i32, i32) {
    %c0_i32 = arith.constant 0 : i32
    %c0_i32_0 = arith.constant 0 : i32
    return %arg0, %c0_i32 : i32, i32
  }
  func.func @transform_1(%arg0: i32) -> (i32, i32) {
    %c0_i32 = arith.constant 0 : i32
    %c0_i32_0 = arith.constant 0 : i32
    %c0_i32_1 = arith.constant 0 : i32
    return %c0_i32, %c0_i32_0 : i32, i32
  }
  func.func @transform_2(%arg0: i32) -> (i32, i32) {
    %c0_i32 = arith.constant 0 : i32
    %c0_i32_0 = arith.constant 0 : i32
    %c0_i32_1 = arith.constant 0 : i32
    return %c0_i32, %c0_i32_0 : i32, i32
  }
  func.func @transform_3(%arg0: i32) -> (i32, i32) {
    %c0_i32 = arith.constant 0 : i32
    %c0_i32_0 = arith.constant 0 : i32
    %c0_i32_1 = arith.constant 0 : i32
    return %c0_i32, %c0_i32_0 : i32, i32
  }
  func.func @transform_4(%arg0: i32) -> (i32, i32) {
    %c0_i32 = arith.constant 0 : i32
    %c0_i32_0 = arith.constant 0 : i32
    %c0_i32_1 = arith.constant 0 : i32
    return %c0_i32, %c0_i32_0 : i32, i32
  }
  func.func @transform_5(%arg0: i32) -> (i32, i32) {
    %c0_i32 = arith.constant 0 : i32
    %c0_i32_0 = arith.constant 0 : i32
    return %arg0, %c0_i32 : i32, i32
  }
}

</mosaic_0001>

<llo_original>
// kernel: tpu_custom_call.1
$region0: #{tpu_custom_call.1}
  #allocation0 [shape = 'u32[]', space=smem, size = 0x4, offset = 0x4, fixed_abs, tag = 'smem constant byte address 0x4 - core index']
  #allocation1 [shape = 'u32[144,128]{1,0:T(1,128)}', space=vmem, size = 0x12000, scoped, tag = 'internal scratch']
  %s0 = inlined_call_operand.hbm [shape: bf16[8,32], index: 0, kind: input, shape index: {}]
  %s1 = inlined_call_operand.hbm [shape: bf16[32,32], index: 1, kind: input, shape index: {}]
  %s2 = inlined_call_operand.vmem [shape: f32[1,32], index: 2, kind: input, shape index: {}]
  %s3 = inlined_call_operand.hbm [shape: bf16[32,128], index: 3, kind: input, shape index: {}]
  %s4 = inlined_call_operand.vmem [shape: f32[1,128], index: 4, kind: input, shape index: {}]
  %s5 = inlined_call_operand.hbm [shape: f32[8,128], index: 5, kind: output, shape index: {}]
  %s6 = sld [smem:[#allocation0]]
  $region42: #{tpu_custom_call.1} parent=0
    _
  %s8 = ssub.s32 1, %s6
  %s9 = scalar_select 0, %s8, %s6
  $region1: #{tpu_custom_call.1} parent=0
    #allocation2 [shape = 'u8[2048]{0}', space=vmem, size = 0x800, scoped, tag = 'input window, operand 0, single buffered']
    #allocation3 [shape = 's32[1]{0}', space=sflag, size = 0x4, scoped, tag = 'scoped memory for tpu_custom_call.1']
    #allocation4 [shape = 's32[1]{0}', space=sflag, size = 0x4, scoped, tag = 'scoped memory for tpu_custom_call.1']
    #allocation5 [shape = 'u8[8192]{0}', space=vmem, size = 0x2000, scoped, tag = 'input window, operand 1, single buffered']
    #allocation6 [shape = 's32[1]{0}', space=sflag, size = 0x4, scoped, tag = 'scoped memory for tpu_custom_call.1']
    #allocation7 [shape = 'u8[8192]{0}', space=vmem, size = 0x2000, scoped, tag = 'input window, operand 3, single buffered']
    #allocation8 [shape = 'u8[4096]{0}', space=vmem, size = 0x1000, scoped, tag = 'output window, operand 0, single buffered']
    %10 = vsyncpa [#allocation3], 0
    %11 = vsyncpa [#allocation6], 0
    %12 = vsyncpa [#allocation4], 0
    // Predicated region
    $region2: #{tpu_custom_call.1} parent=1 // pred_check
      _
    $region3: #{tpu_custom_call.1} parent=1 // pred_check_branch
      %14 = sbr.rel (0) target = $region5
    $region4: #{tpu_custom_call.1} parent=1 // pred_region
      %s16 = ssub.s32 64, 64
      %17 = vsyncadd [#allocation3], %s16
      %s19 = sshll.u32 [#allocation2], 4
      %s20 = int_to_ptr.vmem [resolvable:$true] %s19
      %22 = dma.hbm_to_vmem [thread:$0]  %s0, 64, %s20, [#allocation3]
    $region5: #{tpu_custom_call.1} parent=1 // pred_fallthru
      _
    // Predicated region
    $region6: #{tpu_custom_call.1} parent=1 // pred_check
      _
    $region7: #{tpu_custom_call.1} parent=1 // pred_check_branch
      %24 = sbr.rel (0) target = $region9
    $region8: #{tpu_custom_call.1} parent=1 // pred_region
      %s26 = ssub.s32 256, 256
      %27 = vsyncadd [#allocation6], %s26
      %s28 = sshll.u32 [#allocation5], 4
      %s29 = int_to_ptr.vmem [resolvable:$true] %s28
      %34 = dma.hbm_to_vmem [thread:$0]  %s1, 256, %s29, [#allocation6], 64, 64, 4
    $region9: #{tpu_custom_call.1} parent=1 // pred_fallthru
      _
    // Predicated region
    $region10: #{tpu_custom_call.1} parent=1 // pred_check
      _
    $region11: #{tpu_custom_call.1} parent=1 // pred_check_branch
      %36 = sbr.rel (0) target = $region13
    $region12: #{tpu_custom_call.1} parent=1 // pred_region
      _
    $region13: #{tpu_custom_call.1} parent=1 // pred_fallthru
      _
    // Predicated region
    $region14: #{tpu_custom_call.1} parent=1 // pred_check
      _
    $region15: #{tpu_custom_call.1} parent=1 // pred_check_branch
      %38 = sbr.rel (0) target = $region17
    $region16: #{tpu_custom_call.1} parent=1 // pred_region
      %s40 = ssub.s32 256, 256
      %41 = vsyncadd [#allocation6], %s40
      %s42 = sshll.u32 [#allocation7], 4
      %s43 = int_to_ptr.vmem [resolvable:$true] %s42
      %48 = dma.hbm_to_vmem [thread:$0]  %s3, 256, %s43, [#allocation6], 64, 64, 4
    $region17: #{tpu_custom_call.1} parent=1 // pred_fallthru
      _
    // Predicated region
    $region18: #{tpu_custom_call.1} parent=1 // pred_check
      _
    $region19: #{tpu_custom_call.1} parent=1 // pred_check_branch
      %50 = sbr.rel (0) target = $region21
    $region20: #{tpu_custom_call.1} parent=1 // pred_region
      _
    $region21: #{tpu_custom_call.1} parent=1 // pred_fallthru
      _
    // Predicated region
    $region22: #{tpu_custom_call.1} parent=1 // pred_check
      _
    $region23: #{tpu_custom_call.1} parent=1 // pred_check_branch
      %52 = sbr.rel (0) target = $region25
    $region24: #{tpu_custom_call.1} parent=1 // pred_region
      %53 = dma.done [#allocation3], 64
    $region25: #{tpu_custom_call.1} parent=1 // pred_fallthru
      _
    // Predicated region
    $region26: #{tpu_custom_call.1} parent=1 // pred_check
      _
    $region27: #{tpu_custom_call.1} parent=1 // pred_check_branch
      %55 = sbr.rel (0) target = $region29
    $region28: #{tpu_custom_call.1} parent=1 // pred_region
      %56 = dma.done [#allocation6], 256
    $region29: #{tpu_custom_call.1} parent=1 // pred_fallthru
      _
    // Predicated region
    $region30: #{tpu_custom_call.1} parent=1 // pred_check
      _
    $region31: #{tpu_custom_call.1} parent=1 // pred_check_branch
      %58 = sbr.rel (0) target = $region33
    $region32: #{tpu_custom_call.1} parent=1 // pred_region
      %59 = dma.done [#allocation6], 256
    $region33: #{tpu_custom_call.1} parent=1 // pred_fallthru
      _
    %v61 = vld [vmem:[#allocation2] sm:$0xf]
    %v62 = vld [vmem:[#allocation5] sm:$0xf]
    %v63 = vld [vmem:[#allocation5 + $0x4] sm:$0xf]
    %v64 = vld [vmem:[#allocation5 + $0x8] sm:$0xf]
    %v65 = vld [vmem:[#allocation5 + $0xc] sm:$0xf]
    %v66 = vld [vmem:[%s2] sm:$0x1]
    %v68 = vlaneseq
    %v69 = vshrl.u32 %v68, 7
    %v70 = vsub.s32 0, %v69
    %v71 = vrot.slane %v66, %v70
    %v77 = vunpack.c.l.b16 %v62
    %v78 = vunpack.c.l.b16 %v63
    %v79 = vunpack.c.l.b16 %v64
    %v80 = vunpack.c.l.b16 %v65
    %v81 = vpack.c.b16 %v78, %v77
    %v82 = vpack.c.b16 %v80, %v79
    %vm85 = vcmask 261120
    %v87 = vsel %vm85, %v61, 0
    %89 = vmatprep.subr.bf16.mxu0 0
    %90 = vmatpush1.bf16.msra.mxu0 0
    %91 = vmatprep.subr.bf16.mxu0 0
    %92 = vmatpush1.bf16.msra.mxu0 0
    %93 = vmatprep.subr.bf16.mxu0 0
    %94 = vmatpush1.bf16.msra.mxu0 0
    %95 = vmatprep.subr.bf16.mxu0 0
    %96 = vmatpush1.bf16.msra.mxu0 0
    %97 = vmatprep.subr.bf16.mxu0 0
    %98 = vmatpush1.bf16.msra.mxu0 0
    %99 = vmatprep.subr.bf16.mxu0 0
    %100 = vmatpush1.bf16.msra.mxu0 0
    %101 = vmatprep.subr.bf16.mxu0 0
    %102 = vmatpush1.bf16.msra.mxu0 %v82
    %103 = vmatprep.subr.bf16.mxu0 0
    %104 = vmatpush1.bf16.msra.mxu0 %v81
    %105 = vmatprep.subr.bf16.mxu0 0
    %106 = vmatpush2.bf16.msra.mxu0 0
    %107 = vmatprep.subr.bf16.mxu0 0
    %108 = vmatpush2.bf16.msra.mxu0 0
    %109 = vmatprep.subr.bf16.mxu0 0
    %110 = vmatpush2.bf16.msra.mxu0 0
    %111 = vmatprep.subr.bf16.mxu0 0
    %112 = vmatpush2.bf16.msra.mxu0 0
    %113 = vmatprep.subr.bf16.mxu0 0
    %114 = vmatpush2.bf16.msra.mxu0 0
    %115 = vmatprep.subr.bf16.mxu0 0
    %116 = vmatpush2.bf16.msra.mxu0 0
    %117 = vmatprep.subr.bf16.mxu0 0
    %118 = vmatpush2.bf16.msra.mxu0 0
    %119 = vmatprep.subr.bf16.mxu0 0
    %120 = vmatpush2.bf16.msra.mxu0 0
    %121 = vmatprep.mubr.bf16.mxu0 0
    %122 = vmatmul.mubr.bf16.gmra.mxu0 %v87
    %v123 = vpop.f32.mrf.mxu0
    %v124 = vadd.f32 %v71, %v123
    %v125 = vpop.f32.mrf.mxu0
    %v126 = vpop.f32.mrf.mxu0
    %v127 = vpop.f32.mrf.mxu0
    %128 = vdwg.mxu0
    %v129 = vtanh.pop %v124
    %v130 = vpack.c.bf16 %v129, %v129
    %v131 = vld [vmem:[#allocation7] sm:$0xf]
    %v132 = vld [vmem:[#allocation7 + $0x4] sm:$0xf]
    %v133 = vld [vmem:[#allocation7 + $0x8] sm:$0xf]
    %v134 = vld [vmem:[#allocation7 + $0xc] sm:$0xf]
    %v135 = vld [vmem:[%s4] sm:$0x1]
    %v137 = vlaneseq
    %v138 = vshrl.u32 %v137, 7
    %v139 = vsub.s32 0, %v138
    %v140 = vrot.slane %v135, %v139
    %v146 = vunpack.c.l.b16 %v131
    %v147 = vunpack.c.l.b16 %v132
    %v148 = vunpack.c.l.b16 %v133
    %v149 = vunpack.c.l.b16 %v134
    %v150 = vpack.c.b16 %v147, %v146
    %v151 = vpack.c.b16 %v149, %v148
    %v155 = vsel %vm85, %v130, 0
    %157 = vmatprep.subr.bf16.mxu0 0
    %158 = vmatpush1.bf16.msra.mxu0 0
    %159 = vmatprep.subr.bf16.mxu0 0
    %160 = vmatpush1.bf16.msra.mxu0 0
    %161 = vmatprep.subr.bf16.mxu0 0
    %162 = vmatpush1.bf16.msra.mxu0 0
    %163 = vmatprep.subr.bf16.mxu0 0
    %164 = vmatpush1.bf16.msra.mxu0 0
    %165 = vmatprep.subr.bf16.mxu0 0
    %166 = vmatpush1.bf16.msra.mxu0 0
    %167 = vmatprep.subr.bf16.mxu0 0
    %168 = vmatpush1.bf16.msra.mxu0 0
    %169 = vmatprep.subr.bf16.mxu0 0
    %170 = vmatpush1.bf16.msra.mxu0 %v151
    %171 = vmatprep.subr.bf16.mxu0 0
    %172 = vmatpush1.bf16.msra.mxu0 %v150
    %173 = vmatprep.subr.bf16.mxu0 0
    %174 = vmatpush2.bf16.msra.mxu0 0
    %175 = vmatprep.subr.bf16.mxu0 0
    %176 = vmatpush2.bf16.msra.mxu0 0
    %177 = vmatprep.subr.bf16.mxu0 0
    %178 = vmatpush2.bf16.msra.mxu0 0
    %179 = vmatprep.subr.bf16.mxu0 0
    %180 = vmatpush2.bf16.msra.mxu0 0
    %181 = vmatprep.subr.bf16.mxu0 0
    %182 = vmatpush2.bf16.msra.mxu0 0
    %183 = vmatprep.subr.bf16.mxu0 0
    %184 = vmatpush2.bf16.msra.mxu0 0
    %185 = vmatprep.subr.bf16.mxu0 0
    %186 = vmatpush2.bf16.msra.mxu0 0
    %187 = vmatprep.subr.bf16.mxu0 0
    %188 = vmatpush2.bf16.msra.mxu0 0
    %189 = vmatprep.mubr.bf16.mxu0 0
    %190 = vmatmul.mubr.bf16.gmra.mxu0 %v155
    %v191 = vpop.f32.mrf.mxu0
    %v192 = vadd.f32 %v140, %v191
    %v193 = vpop.f32.mrf.mxu0
    %v194 = vpop.f32.mrf.mxu0
    %v195 = vpop.f32.mrf.mxu0
    %196 = vdwg.mxu0
    %v197 = vxor.u32 %v192, 2147483648
    %v198 = vmul.f32 %v197, 1.442695
    %v199 = vpow.pop %v198
    %v200 = vadd.f32 %v199, 1.0
    %v201 = vrcp.pop %v200
    %v202 = vmul.f32 1.0, %v201
    %203 = vst [vmem:[#allocation8] sm:$0xff] %v202
    // Predicated region
    $region34: #{tpu_custom_call.1} parent=1 // pred_check
      _
    $region35: #{tpu_custom_call.1} parent=1 // pred_check_branch
      %205 = sbr.rel (0) target = $region37
    $region36: #{tpu_custom_call.1} parent=1 // pred_region
      %s207 = ssub.s32 128, 128
      %208 = vsyncadd [#allocation4], %s207
      %s210 = sshll.u32 [#allocation8], 4
      %s211 = int_to_ptr.vmem [resolvable:$true] %s210
      %213 = dma.vmem_to_hbm [thread:$0]  %s211, 128, %s5, [#allocation4]
    $region37: #{tpu_custom_call.1} parent=1 // pred_fallthru
      _
    // Predicated region
    $region38: #{tpu_custom_call.1} parent=1 // pred_check
      _
    $region39: #{tpu_custom_call.1} parent=1 // pred_check_branch
      %215 = sbr.rel (0) target = $region41
    $region40: #{tpu_custom_call.1} parent=1 // pred_region
      %216 = dma.done [#allocation4], 128
    $region41: #{tpu_custom_call.1} parent=1 // pred_fallthru
      _
    %217 = vsyncpa [#allocation3], 1
    %218 = vsyncpa [#allocation6], 1
    %219 = vsyncpa [#allocation4], 1

</llo_original>
